<compile_context>
chip_gen: v5e
topology: v5e:2x2
jax: 0.10.0
libtpu: 0.0.40
codegen_flags: <defaults>
</compile_context>

<pallas_src>
import functools

import jax
import jax.numpy as jnp
from jax.experimental import pallas as pl
from jax.experimental.pallas import tpu as pltpu


def _center_loss_kernel(x_ref, c_ref, labels_ref, out_ref,
                        *, batch_size, num_classes):
    x = x_ref[...].astype(jnp.float32)          # (B, F)
    centers = c_ref[...]                        # (C, F) f32
    labels = labels_ref[...]                    # (B, 1) int32

    # Vectorized one-hot selection of each sample's center row (no serial
    # gather loop, no per-row masked stores).
    class_ids = jax.lax.broadcasted_iota(
        jnp.int32, (batch_size, num_classes), 1)          # (B, C)
    onehot = (class_ids == labels).astype(jnp.float32)    # (B, C)
    c_sel = jnp.dot(onehot, centers,
                    preferred_element_type=jnp.float32)   # (B, F)

    # Single fused cross-lane reduction: ||x_i - c_{labels_i}||^2 (>= 0, no
    # xsq + csq - 2*xdc cancellation below the clip floor).
    diff = x - c_sel
    d = jnp.sum(diff * diff, axis=1, keepdims=True)       # (B, 1)

    # Out-of-range labels: the reference's one-hot mask zeroes the whole row,
    # so each of its entries clamps to 1e-12.  Mirror that by zeroing d so the
    # clip floor takes over (no lane reduce needed for the validity flag).
    valid = jnp.logical_and(labels >= 0,
                            labels < num_classes).astype(jnp.float32)  # (B, 1)
    d = jnp.clip(d * valid, 1e-12, 1e12)

    # The (C-1) masked-out entries per row are zeros clamped to 1e-12 each in
    # the reference; fold them in as a constant (cosmetic, ~1e-11 total).
    correction = batch_size * (num_classes - 1) * 1e-12
    out_ref[0] = 0.5 * (jnp.sum(d) + correction) / batch_size


def phase_aggregation_loss(x, centers, labels):
    """Computes (loss, centers) matching PhaseAggregationLoss.forward."""
    batch_size, feat = x.shape
    num_classes, feat_c = centers.shape
    assert feat == feat_c == num_classes, (
        "module requires feat_dim == num_classes (centers = eye)")

    labels_2d = labels.astype(jnp.int32).reshape(batch_size, 1)
    centers_f32 = centers.astype(jnp.float32)

    kernel = functools.partial(
        _center_loss_kernel, batch_size=batch_size, num_classes=num_classes)

    cost = pl.CostEstimate(
        flops=2 * batch_size * num_classes * feat + 6 * batch_size * feat,
        transcendentals=0,
        bytes_accessed=4 * (batch_size * feat + num_classes * feat
                            + batch_size + 1),
    )

    loss = pl.pallas_call(
        kernel,
        out_shape=jax.ShapeDtypeStruct((1,), jnp.float32),
        in_specs=[
            pl.BlockSpec(memory_space=pltpu.MemorySpace.VMEM),   # x (B, F)
            pl.BlockSpec(memory_space=pltpu.MemorySpace.VMEM),   # centers (C, F)
            pl.BlockSpec(memory_space=pltpu.MemorySpace.VMEM),   # labels (B, 1)
        ],
        out_specs=pl.BlockSpec(memory_space=pltpu.MemorySpace.SMEM),
        cost_estimate=cost,
    )(x, centers_f32, labels_2d)

    return loss[0], centers


if __name__ == "__main__":
    # Synthetic config: args.class_number = 7 -> num_classes = 6.
    num_classes = 6
    batch_size = 8

    key = jax.random.PRNGKey(0)
    kx, kl = jax.random.split(key)

    # x: (batch, feat_dim) with feat_dim == num_classes (required by the
    # module's x @ centers.T with centers = eye(num_classes)).
    x = jax.random.normal(kx, (batch_size, num_classes), dtype=jnp.float32)
    labels = jax.random.randint(kl, (batch_size,), 0, num_classes,
                                dtype=jnp.int32)

    # Deterministic parameter init: centers = eye(num_classes), like the module.
    centers = jnp.eye(num_classes, dtype=jnp.float32)

    loss, out_centers = phase_aggregation_loss(x, centers, labels)
    jax.block_until_ready(loss)
    jax.block_until_ready(out_centers)

    # Reference check in plain JAX (original full-distmat formulation).
    xsq = jnp.sum(x * x, axis=1, keepdims=True)
    csq = jnp.sum(centers * centers, axis=1, keepdims=True).T
    distmat = xsq + csq - 2.0 * (x @ centers.T)
    mask = (labels[:, None] == jnp.arange(num_classes)[None, :]).astype(
        jnp.float32)
    ref = 0.5 * jnp.sum(jnp.clip(distmat * mask, 1e-12, 1e12)) / batch_size
    assert jnp.allclose(loss, ref, rtol=1e-5, atol=1e-5), (loss, ref)
    assert jnp.array_equal(out_centers, centers)

    print("KERNEL_OK")
</pallas_src>

<mosaic_0001>
module attributes {stable_mosaic.version = 11 : i64} {
  func.func @_center_loss_kernel(%arg0: memref<8x6xf32, #tpu.memory_space<vmem>>, %arg1: memref<6x6xf32, #tpu.memory_space<vmem>>, %arg2: memref<8x1xi32, #tpu.memory_space<vmem>>, %arg3: memref<1xf32, #tpu.memory_space<smem>>) attributes {dimension_semantics = [], scalar_prefetch = 0 : i64, scratch_operands = 0 : i64, tpu.core_type = #tpu.core_type<tc>} {
    %c0 = arith.constant 0 : index
    %c0_0 = arith.constant 0 : index
    %0 = vector.load %arg0[%c0, %c0_0] : memref<8x6xf32, #tpu.memory_space<vmem>>, vector<8x6xf32>
    %c0_1 = arith.constant 0 : index
    %c0_2 = arith.constant 0 : index
    %1 = vector.load %arg1[%c0_1, %c0_2] : memref<6x6xf32, #tpu.memory_space<vmem>>, vector<6x6xf32>
    %c0_3 = arith.constant 0 : index
    %c0_4 = arith.constant 0 : index
    %2 = vector.load %arg2[%c0_3, %c0_4] : memref<8x1xi32, #tpu.memory_space<vmem>>, vector<8x1xi32>
    %3 = tpu.iota {dimensions = array<i32: 1>} : vector<8x6xi32>
    %4 = vector.broadcast %2 : vector<8x1xi32> to vector<8x6xi32>
    %5 = arith.cmpi eq, %3, %4 : vector<8x6xi32>
    %6 = arith.extui %5 : vector<8x6xi1> to vector<8x6xi32>
    %7 = arith.sitofp %6 : vector<8x6xi32> to vector<8x6xf32>
    %cst = arith.constant dense<0.000000e+00> : vector<8x6xf32>
    %8 = tpu.matmul %7, %1, %cst {dimension_numbers = #tpu.dot_dimension_numbers<[1], [0], [0], [1], [0, 0, 1, 1], [], []>} : vector<8x6xf32>, vector<6x6xf32>, vector<8x6xf32> -> vector<8x6xf32>
    %9 = arith.subf %0, %8 : vector<8x6xf32>
    %10 = arith.mulf %9, %9 : vector<8x6xf32>
    %cst_5 = arith.constant dense<0.000000e+00> : vector<8xf32>
    %11 = vector.multi_reduction <add>, %10, %cst_5 [1] : vector<8x6xf32> to vector<8xf32>
    %12 = vector.shape_cast %11 : vector<8xf32> to vector<8x1xf32>
    %c0_i32 = arith.constant 0 : i32
    %13 = vector.broadcast %c0_i32 : i32 to vector<8x1xi32>
    %14 = arith.cmpi sge, %2, %13 : vector<8x1xi32>
    %c6_i32 = arith.constant 6 : i32
    %15 = vector.broadcast %c6_i32 : i32 to vector<8x1xi32>
    %16 = arith.cmpi slt, %2, %15 : vector<8x1xi32>
    %17 = arith.andi %14, %16 : vector<8x1xi1>
    %18 = arith.extui %17 : vector<8x1xi1> to vector<8x1xi32>
    %19 = arith.sitofp %18 : vector<8x1xi32> to vector<8x1xf32>
    %20 = arith.mulf %12, %19 : vector<8x1xf32>
    %cst_6 = arith.constant 9.99999996E-13 : f32
    %cst_7 = arith.constant 9.99999995E+11 : f32
    %21 = vector.broadcast %cst_6 : f32 to vector<8x1xf32>
    %22 = arith.maximumf %21, %20 : vector<8x1xf32>
    %23 = vector.broadcast %cst_7 : f32 to vector<8x1xf32>
    %24 = arith.minimumf %23, %22 : vector<8x1xf32>
    %25 = vector.shape_cast %24 : vector<8x1xf32> to vector<1x8x1xf32>
    %cst_8 = arith.constant dense<0.000000e+00> : vector<1xf32>
    %26 = vector.multi_reduction <add>, %25, %cst_8 [1, 2] : vector<1x8x1xf32> to vector<1xf32>
    %27 = vector.shape_cast %26 : vector<1xf32> to vector<1x1x1xf32>
    %28 = vector.extract %27[0, 0, 0] : f32 from vector<1x1x1xf32>
    %cst_9 = arith.constant 4.000000e-11 : f32
    %29 = arith.addf %28, %cst_9 : f32
    %cst_10 = arith.constant 5.000000e-01 : f32
    %30 = arith.mulf %cst_10, %29 : f32
    %cst_11 = arith.constant 8.000000e+00 : f32
    %31 = arith.divf %30, %cst_11 : f32
    %c0_12 = arith.constant 0 : index
    %32 = memref.load %arg3[%c0_12] : memref<1xf32, #tpu.memory_space<smem>>
    memref.store %31, %arg3[%c0_12] : memref<1xf32, #tpu.memory_space<smem>>
    return
  }
}

</mosaic_0001>

<llo_original>
// kernel: tpu_custom_call.1
$region0: #{tpu_custom_call.1}
  #allocation0 [shape = 'u32[]', space=smem, size = 0x4, offset = 0x4, fixed_abs, tag = 'smem constant byte address 0x4 - core index']
  #allocation1 [shape = 'u32[72,128]{1,0:T(1,128)}', space=vmem, size = 0x9000, scoped, tag = 'internal scratch']
  %s0 = inlined_call_operand.vmem [shape: f32[8,6], index: 0, kind: input, shape index: {}]
  %s1 = inlined_call_operand.hbm [shape: f32[6,6], index: 1, kind: input, shape index: {}]
  %s2 = inlined_call_operand.vmem [shape: s32[8,1], index: 2, kind: input, shape index: {}]
  %s3 = inlined_call_operand.hbm [shape: f32[1], index: 3, kind: output, shape index: {}]
  %s4 = sld [smem:[#allocation0]]
  $region26: #{tpu_custom_call.1} parent=0
    _
  %s6 = ssub.s32 1, %s4
  %s7 = scalar_select 0, %s6, %s4
  $region1: #{tpu_custom_call.1} parent=0
    #allocation2 [shape = 'u8[4096]{0}', space=vmem, size = 0x1000, scoped, tag = 'input window, operand 1, single buffered']
    #allocation3 [shape = 's32[1]{0}', space=sflag, size = 0x4, scoped, tag = 'scoped memory for tpu_custom_call.1']
    #allocation4 [shape = 's32[1]{0}', space=sflag, size = 0x4, scoped, tag = 'scoped memory for tpu_custom_call.1']
    #allocation5 [shape = 'u8[512]{0}', space=smem, size = 0x200, scoped, tag = 'output window, operand 0, single buffered']
    %8 = vsyncpa [#allocation3], 0
    %9 = vsyncpa [#allocation4], 0
    // Predicated region
    $region2: #{tpu_custom_call.1} parent=1 // pred_check
      _
    $region3: #{tpu_custom_call.1} parent=1 // pred_check_branch
      %11 = sbr.rel (0) target = $region5
    $region4: #{tpu_custom_call.1} parent=1 // pred_region
      _
    $region5: #{tpu_custom_call.1} parent=1 // pred_fallthru
      _
    // Predicated region
    $region6: #{tpu_custom_call.1} parent=1 // pred_check
      _
    $region7: #{tpu_custom_call.1} parent=1 // pred_check_branch
      %13 = sbr.rel (0) target = $region9
    $region8: #{tpu_custom_call.1} parent=1 // pred_region
      %15 = vsyncadd [#allocation3], 0
      %s17 = sshll.u32 %s1, 4
      %s18 = int_to_ptr.hbm [resolvable:$true] %s17
      %s19 = sshll.u32 [#allocation2], 4
      %s20 = int_to_ptr.vmem [resolvable:$true] %s19
      %22 = dma.hbm_to_vmem [thread:$0]  %s18, 128, %s20, [#allocation3]
    $region9: #{tpu_custom_call.1} parent=1 // pred_fallthru
      _
    // Predicated region
    $region10: #{tpu_custom_call.1} parent=1 // pred_check
      _
    $region11: #{tpu_custom_call.1} parent=1 // pred_check_branch
      %24 = sbr.rel (0) target = $region13
    $region12: #{tpu_custom_call.1} parent=1 // pred_region
      _
    $region13: #{tpu_custom_call.1} parent=1 // pred_fallthru
      _
    // Predicated region
    $region14: #{tpu_custom_call.1} parent=1 // pred_check
      _
    $region15: #{tpu_custom_call.1} parent=1 // pred_check_branch
      %26 = sbr.rel (0) target = $region17
    $region16: #{tpu_custom_call.1} parent=1 // pred_region
      %28 = dma.done [#allocation3], 128
    $region17: #{tpu_custom_call.1} parent=1 // pred_fallthru
      _
    %v29 = vld [vmem:[%s0] sm:$0xff]
    %v30 = vld [vmem:[#allocation2] sm:$0x3f]
    %v31 = vld [vmem:[%s2] sm:$0xff]
    %v32 = vlaneseq
    %v33 = vand.u32 %v32, 127
    %34 = vset.pattern.permute.xlu0 0
    %35 = vperm.xlu0 %34, %v31
    %v36 = vpop.permute.xlu0 %35
    %vm37 = vcmp.eq.s32.totalorder %v33, %v36
    %v38 = vsel %vm37, 1, 0
    %v39 = vcvt.s32.f32 %v38
    %vm40 = vcmask 48128
    %v42 = vsel %vm40, %v39, 0
    %vm44 = vcmask 1045504
    %v46 = vsel %vm44, %v30, 0
    %48 = vmatpush.msra.mxu0 0.0
    %49 = vmatpush.msra.mxu0 0.0
    %50 = vmatpush.msra.mxu0 0.0
    %51 = vmatpush.msra.mxu0 0.0
    %52 = vmatpush.msra.mxu0 0.0
    %53 = vmatpush.msra.mxu0 0.0
    %54 = vmatpush.msra.mxu0 0.0
    %55 = vmatpush.msra.mxu0 0.0
    %56 = vmatpush.msra.mxu0 0.0
    %57 = vmatpush.msra.mxu0 0.0
    %58 = vmatpush.msra.mxu0 0.0
    %59 = vmatpush.msra.mxu0 0.0
    %60 = vmatpush.msra.mxu0 0.0
    %61 = vmatpush.msra.mxu0 0.0
    %62 = vmatpush.msra.mxu0 0.0
    %63 = vmatpush.msra.mxu0 %v46
    %64 = vmatmul.f32.gmra.mxu0 %v42
    %v65 = vpop.f32.mrf.mxu0
    %v66 = vadd.f32 0.0, %v65
    %67 = vdwg.mxu0
    %v68 = vsub.f32 %v29, %v66
    %v69 = vmul.f32 %v68, %v68
    %v70 = vsel %vm40, %v69, 0.0
    %71 = vadd.xlane.f32.xlu0 %v70
    %v72 = vpop.xlane.xlu0 %71
    %vm73 = vcmp.ge.s32.totalorder %v31, 0
    %vm74 = vcmp.lt.s32.totalorder %v31, 6
    %vm75 = vmand %vm73, %vm74
    %v76 = vsel %vm75, 1, 0
    %v77 = vcvt.s32.f32 %v76
    %v78 = vmul.f32 %v72, %v77
    %v79 = vmax.f32 %v78, 1e-12
    %v80 = vmin.f32 %v79, 1e+12
    %vm81 = vcmask 7168
    %v82 = vsel %vm81, %v80, 0.0
    %83 = vadd.xlane.f32.xlu0 %v82
    %v84 = vpop.xlane.xlu0 %83
    %v85 = vrot.slane %v84, 4
    %v86 = vadd.f32 %v84, %v85
    %v87 = vrot.slane %v86, 2
    %v88 = vadd.f32 %v86, %v87
    %v89 = vrot.slane %v88, 1
    %v90 = vadd.f32 %v88, %v89
    %s91 = vtos %v90
    %s92 = sadd.f32 %s91, 4e-11
    %s93 = smul.f32 %s92, 0.5
    %v94 = vrcp.pop 8.0
    %v95 = vmul.f32 8.0, %v94
    %v96 = vsub.f32 1.0, %v95
    %v97 = vmul.f32 %v94, %v96
    %v98 = vadd.f32 %v94, %v97
    %vm99 = vweird.f32 %v94
    %v100 = vsel %vm99, %v94, %v98
    %s101 = vtos %v100
    %s102 = smul.f32 %s93, %s101
    %s103 = scalar_lea.smem [#allocation5], 0
    %104 = sst [smem:[%s103]] %s102
    // Predicated region
    $region18: #{tpu_custom_call.1} parent=1 // pred_check
      _
    $region19: #{tpu_custom_call.1} parent=1 // pred_check_branch
      %106 = sbr.rel (0) target = $region21
    $region20: #{tpu_custom_call.1} parent=1 // pred_region
      %108 = vsyncadd [#allocation4], 0
      %s110 = sshll.u32 %s3, 4
      %s111 = int_to_ptr.hbm [resolvable:$true] %s110
      %113 = dma.smem_to_hbm [#allocation5], 16, %s111, [#allocation4]
    $region21: #{tpu_custom_call.1} parent=1 // pred_fallthru
      _
    // Predicated region
    $region22: #{tpu_custom_call.1} parent=1 // pred_check
      _
    $region23: #{tpu_custom_call.1} parent=1 // pred_check_branch
      %115 = sbr.rel (0) target = $region25
    $region24: #{tpu_custom_call.1} parent=1 // pred_region
      %117 = dma.done [#allocation4], 16
    $region25: #{tpu_custom_call.1} parent=1 // pred_fallthru
      _
    %118 = sfence
    %119 = vsyncpa [#allocation3], 1
    %120 = vsyncpa [#allocation4], 1

</llo_original>
